<compile_context>
chip_gen: v7x
topology: tpu7x:2x2x1
jax: 0.10.0
libtpu: 0.0.40
codegen_flags: <defaults>
</compile_context>

<pallas_src>
import functools

import jax
import jax.numpy as jnp
import numpy as np
from jax.experimental import pallas as pl
from jax.experimental.pallas import tpu as pltpu

LANE = 128
SUBLANE = 8


def _round_up(x, m):
    return (x + m - 1) // m * m


# ---------------------------------------------------------------------------
# Kernel: o = relu(x @ W1 + b1) @ W2 + b2  on one batch tile.
#   x_ref : (TB, S)      true feature width
#   w1_ref: (S, H_p)     pre-transposed, hidden dim padded to a lane multiple
#   b1_ref: (1, H_p)
#   w2_ref: (H_p, A)     pre-transposed, true action width
#   b2_ref: (1, A)
#   o_ref : (TB, A)
# ---------------------------------------------------------------------------
def _net_kernel(x_ref, w1_ref, b1_ref, w2_ref, b2_ref, o_ref):
    h = jnp.dot(x_ref[...], w1_ref[...],
                preferred_element_type=jnp.float32,
                precision=jax.lax.Precision.HIGHEST) + b1_ref[...]
    h = jnp.maximum(h, 0.0)
    o_ref[...] = (jnp.dot(h, w2_ref[...],
                          preferred_element_type=jnp.float32,
                          precision=jax.lax.Precision.HIGHEST)
                  + b2_ref[...]).astype(o_ref.dtype)


# ---------------------------------------------------------------------------
# One-time host-side weight prep (NOT on the per-call path):
# PyTorch Linear stores W as (out, in); the kernel wants (in, out). Pad only the
# hidden dim to a lane multiple; padded hidden lanes see relu(0+0)=0 and hit zero
# rows of W2, so the result is exact.
# ---------------------------------------------------------------------------
def prepare_params(params):
    H, S = params["w1"].shape          # (50, N_STATES)
    A = params["w2"].shape[0]          # N_ACTIONS
    H_p = _round_up(H, LANE)
    w1 = jnp.zeros((S, H_p), jnp.float32).at[:, :H].set(params["w1"].T.astype(jnp.float32))
    b1 = jnp.zeros((1, H_p), jnp.float32).at[0, :H].set(params["b1"].astype(jnp.float32))
    w2 = jnp.zeros((H_p, A), jnp.float32).at[:H, :].set(params["w2"].T.astype(jnp.float32))
    b2 = params["b2"].astype(jnp.float32).reshape(1, A)
    return dict(w1=w1, b1=b1, w2=w2, b2=b2)


# ---------------------------------------------------------------------------
# Jitted forward: pad only the batch dim (if needed), run the fused kernel,
# slice off padded batch rows. Output columns are already the true width A.
# ---------------------------------------------------------------------------
@functools.partial(jax.jit, static_argnames=("block_b", "min_grid_steps"))
def net_forward(prepped, x, *, block_b=512, min_grid_steps=2):
    B, S = x.shape
    S_w, H_p = prepped["w1"].shape
    A = prepped["w2"].shape[1]
    assert S == S_w, "input feature dim does not match prepared weights"

    B8 = _round_up(B, SUBLANE)
    # Big tiles amortize per-grid-step cost on v5e/v6e (1 TC/chip); min_grid_steps=2 keeps
    # at least two "parallel" steps on large batches so v7x uses both TensorCores.
    TB = min(block_b, max(SUBLANE, _round_up(pl.cdiv(B8, min_grid_steps), SUBLANE)))
    B_p = _round_up(B, TB)

    x_p = x.astype(jnp.float32)
    if B_p != B:
        x_p = jnp.zeros((B_p, S), jnp.float32).at[:B, :].set(x_p)

    out = pl.pallas_call(
        _net_kernel,
        grid=(B_p // TB,),
        in_specs=[
            pl.BlockSpec((TB, S), lambda i: (i, 0)),     # x: true feature width, tiled over batch
            pl.BlockSpec((S, H_p), lambda i: (0, 0)),    # W1: resident
            pl.BlockSpec((1, H_p), lambda i: (0, 0)),    # b1
            pl.BlockSpec((H_p, A), lambda i: (0, 0)),    # W2: resident, true action width
            pl.BlockSpec((1, A), lambda i: (0, 0)),      # b2
        ],
        out_specs=pl.BlockSpec((TB, A), lambda i: (i, 0)),   # true-width output tile
        out_shape=jax.ShapeDtypeStruct((B_p, A), jnp.float32),
        compiler_params=pltpu.CompilerParams(
            dimension_semantics=("parallel",),
            vmem_limit_bytes=32 * 1024 * 1024,
        ),
    )(x_p, prepped["w1"], prepped["b1"], prepped["w2"], prepped["b2"])

    return out[:B] if B_p != B else out


# ---------------------------------------------------------------------------
# Deterministic parameter init (matches the PyTorch module's init style).
# ---------------------------------------------------------------------------
def init_params(key, n_states, n_actions, hidden=50):
    k1, k2, k3, k4 = jax.random.split(key, 4)
    return dict(
        w1=0.1 * jax.random.normal(k1, (hidden, n_states), jnp.float32),      # normal_(0, 0.1)
        b1=jax.random.uniform(k2, (hidden,), jnp.float32,
                              -1.0 / np.sqrt(n_states), 1.0 / np.sqrt(n_states)),
        w2=0.1 * jax.random.normal(k3, (n_actions, hidden), jnp.float32),     # normal_(0, 0.1)
        b2=jax.random.uniform(k4, (n_actions,), jnp.float32,
                              -1.0 / np.sqrt(hidden), 1.0 / np.sqrt(hidden)),
    )


if __name__ == "__main__":
    N_STATES, N_ACTIONS, HIDDEN, BATCH = 4, 2, 50, 2

    key = jax.random.PRNGKey(0)
    pkey, xkey = jax.random.split(key)
    params = init_params(pkey, N_STATES, N_ACTIONS, HIDDEN)
    prepped = prepare_params(params)                       # one-time weight prep
    x = jax.random.normal(xkey, (BATCH, N_STATES), jnp.float32)

    y = jax.block_until_ready(net_forward(prepped, x))

    # Pure-numpy reference of the same forward pass.
    xn = np.asarray(x, dtype=np.float64)
    h_ref = np.maximum(xn @ np.asarray(params["w1"], np.float64).T
                       + np.asarray(params["b1"], np.float64), 0.0)
    y_ref = h_ref @ np.asarray(params["w2"], np.float64).T + np.asarray(params["b2"], np.float64)

    assert y.shape == (BATCH, N_ACTIONS)
    np.testing.assert_allclose(np.asarray(y), y_ref, rtol=1e-4, atol=1e-5)

    print("KERNEL_OK")
</pallas_src>

<mosaic_0001>
module attributes {stable_mosaic.version = 11 : i64} {
  func.func @_net_kernel(%arg0: i32, %arg1: memref<8x4xf32, #tpu.memory_space<vmem>>, %arg2: memref<4x128xf32, #tpu.memory_space<vmem>>, %arg3: memref<1x128xf32, #tpu.memory_space<vmem>>, %arg4: memref<128x2xf32, #tpu.memory_space<vmem>>, %arg5: memref<1x2xf32, #tpu.memory_space<vmem>>, %arg6: memref<8x2xf32, #tpu.memory_space<vmem>>) attributes {dimension_semantics = [#tpu.dimension_semantics<parallel>], iteration_bounds = array<i64: 1>, scalar_prefetch = 0 : i64, scratch_operands = 0 : i64, tpu.core_type = #tpu.core_type<tc>, window_params = [{transform_indices = @transform_0, window_bounds = array<i64: 8, 4>}, {pipeline_mode = #tpu.pipeline_mode<synchronous>, transform_indices = @transform_1, window_bounds = array<i64: 4, 128>}, {pipeline_mode = #tpu.pipeline_mode<synchronous>, transform_indices = @transform_2, window_bounds = array<i64: 1, 128>}, {pipeline_mode = #tpu.pipeline_mode<synchronous>, transform_indices = @transform_3, window_bounds = array<i64: 128, 2>}, {pipeline_mode = #tpu.pipeline_mode<synchronous>, transform_indices = @transform_4, window_bounds = array<i64: 1, 2>}, {transform_indices = @transform_5, window_bounds = array<i64: 8, 2>}]} {
    %c0 = arith.constant 0 : index
    %c0_0 = arith.constant 0 : index
    %0 = vector.load %arg1[%c0, %c0_0] : memref<8x4xf32, #tpu.memory_space<vmem>>, vector<8x4xf32>
    %c0_1 = arith.constant 0 : index
    %c0_2 = arith.constant 0 : index
    %1 = vector.load %arg2[%c0_1, %c0_2] : memref<4x128xf32, #tpu.memory_space<vmem>>, vector<4x128xf32>
    %cst = arith.constant dense<0.000000e+00> : vector<8x128xf32>
    %2 = tpu.matmul %0, %1, %cst {dimension_numbers = #tpu.dot_dimension_numbers<[1], [0], [0], [1], [0, 0, 1, 1], [], []>, precision = #tpu.contract_precision<fp32>} : vector<8x4xf32>, vector<4x128xf32>, vector<8x128xf32> -> vector<8x128xf32>
    %c0_3 = arith.constant 0 : index
    %c0_4 = arith.constant 0 : index
    %3 = vector.load %arg3[%c0_3, %c0_4] : memref<1x128xf32, #tpu.memory_space<vmem>>, vector<1x128xf32>
    %4 = vector.broadcast %3 : vector<1x128xf32> to vector<8x128xf32>
    %5 = arith.addf %2, %4 : vector<8x128xf32>
    %cst_5 = arith.constant 0.000000e+00 : f32
    %6 = vector.broadcast %cst_5 : f32 to vector<8x128xf32>
    %7 = arith.maximumf %5, %6 : vector<8x128xf32>
    %c0_6 = arith.constant 0 : index
    %c0_7 = arith.constant 0 : index
    %8 = vector.load %arg4[%c0_6, %c0_7] : memref<128x2xf32, #tpu.memory_space<vmem>>, vector<128x2xf32>
    %cst_8 = arith.constant dense<0.000000e+00> : vector<8x2xf32>
    %9 = tpu.matmul %7, %8, %cst_8 {dimension_numbers = #tpu.dot_dimension_numbers<[1], [0], [0], [1], [0, 0, 1, 1], [], []>, precision = #tpu.contract_precision<fp32>} : vector<8x128xf32>, vector<128x2xf32>, vector<8x2xf32> -> vector<8x2xf32>
    %c0_9 = arith.constant 0 : index
    %c0_10 = arith.constant 0 : index
    %10 = vector.load %arg5[%c0_9, %c0_10] : memref<1x2xf32, #tpu.memory_space<vmem>>, vector<1x2xf32>
    %11 = vector.broadcast %10 : vector<1x2xf32> to vector<8x2xf32>
    %12 = arith.addf %9, %11 : vector<8x2xf32>
    %c0_11 = arith.constant 0 : index
    %c0_12 = arith.constant 0 : index
    %13 = vector.load %arg6[%c0_11, %c0_12] : memref<8x2xf32, #tpu.memory_space<vmem>>, vector<8x2xf32>
    tpu.vector_store %arg6[%c0_11, %c0_12], %12 {strides = array<i32>} : memref<8x2xf32, #tpu.memory_space<vmem>>, vector<8x2xf32>,
    return
  }
  func.func @transform_0(%arg0: i32) -> (i32, i32) {
    %c0_i32 = arith.constant 0 : i32
    %c0_i32_0 = arith.constant 0 : i32
    return %arg0, %c0_i32 : i32, i32
  }
  func.func @transform_1(%arg0: i32) -> (i32, i32) {
    %c0_i32 = arith.constant 0 : i32
    %c0_i32_0 = arith.constant 0 : i32
    %c0_i32_1 = arith.constant 0 : i32
    return %c0_i32, %c0_i32_0 : i32, i32
  }
  func.func @transform_2(%arg0: i32) -> (i32, i32) {
    %c0_i32 = arith.constant 0 : i32
    %c0_i32_0 = arith.constant 0 : i32
    %c0_i32_1 = arith.constant 0 : i32
    return %c0_i32, %c0_i32_0 : i32, i32
  }
  func.func @transform_3(%arg0: i32) -> (i32, i32) {
    %c0_i32 = arith.constant 0 : i32
    %c0_i32_0 = arith.constant 0 : i32
    %c0_i32_1 = arith.constant 0 : i32
    return %c0_i32, %c0_i32_0 : i32, i32
  }
  func.func @transform_4(%arg0: i32) -> (i32, i32) {
    %c0_i32 = arith.constant 0 : i32
    %c0_i32_0 = arith.constant 0 : i32
    %c0_i32_1 = arith.constant 0 : i32
    return %c0_i32, %c0_i32_0 : i32, i32
  }
  func.func @transform_5(%arg0: i32) -> (i32, i32) {
    %c0_i32 = arith.constant 0 : i32
    %c0_i32_0 = arith.constant 0 : i32
    return %arg0, %c0_i32 : i32, i32
  }
}

</mosaic_0001>

<llo_original>
// kernel: net_forward.1
$region0: #{net_forward.1}
  #allocation0 [shape = 'u32[]', space=smem, size = 0x4, offset = 0x4, fixed_abs, tag = 'smem constant byte address 0x4 - core index']
  #allocation1 [shape = 'u32[144,128]{1,0:T(1,128)}', space=vmem, size = 0x12000, scoped, tag = 'internal scratch']
  %s0 = inlined_call_operand.vmem [shape: f32[8,4], index: 0, kind: input, shape index: {}]
  %s1 = inlined_call_operand.vmem [shape: f32[4,128], index: 1, kind: input, shape index: {}]
  %s2 = inlined_call_operand.vmem [shape: f32[1,128], index: 2, kind: input, shape index: {}]
  %s3 = inlined_call_operand.vmem [shape: f32[128,2], index: 3, kind: input, shape index: {}]
  %s4 = inlined_call_operand.vmem [shape: f32[1,2], index: 4, kind: input, shape index: {}]
  %s5 = inlined_call_operand.vmem [shape: f32[8,2], index: 5, kind: output, shape index: {}]
  %s6 = sld [smem:[#allocation0]]
  $region30: #{net_forward.1} parent=0
    _
  %s8 = ssub.s32 1, %s6
  %s9 = scalar_select 0, %s8, %s6
  // Predicated region
  $region2: #{net_forward.1} parent=0 // pred_check
    _
  $region3: #{net_forward.1} parent=0 // pred_check_branch
    %11 = sbr.rel (0) target = $region5
  $region4: #{net_forward.1} parent=0 // pred_region
    _
  $region5: #{net_forward.1} parent=0 // pred_fallthru
    _
  // Predicated region
  $region6: #{net_forward.1} parent=0 // pred_check
    _
  $region7: #{net_forward.1} parent=0 // pred_check_branch
    %13 = sbr.rel (0) target = $region9
  $region8: #{net_forward.1} parent=0 // pred_region
    _
  $region9: #{net_forward.1} parent=0 // pred_fallthru
    _
  // Predicated region
  $region10: #{net_forward.1} parent=0 // pred_check
    _
  $region11: #{net_forward.1} parent=0 // pred_check_branch
    %15 = sbr.rel (0) target = $region13
  $region12: #{net_forward.1} parent=0 // pred_region
    _
  $region13: #{net_forward.1} parent=0 // pred_fallthru
    _
  // Predicated region
  $region14: #{net_forward.1} parent=0 // pred_check
    _
  $region15: #{net_forward.1} parent=0 // pred_check_branch
    %17 = sbr.rel (0) target = $region17
  $region16: #{net_forward.1} parent=0 // pred_region
    _
  $region17: #{net_forward.1} parent=0 // pred_fallthru
    _
  // Predicated region
  $region18: #{net_forward.1} parent=0 // pred_check
    _
  $region19: #{net_forward.1} parent=0 // pred_check_branch
    %19 = sbr.rel (0) target = $region21
  $region20: #{net_forward.1} parent=0 // pred_region
    _
  $region21: #{net_forward.1} parent=0 // pred_fallthru
    _
  %v20 = vld [vmem:[%s0] sm:$0xff]
  %v21 = vld [vmem:[%s1] sm:$0xf]
  %v22 = vld [vmem:[%s2] sm:$0x1]
  %v24 = vlaneseq
  %v25 = vshrl.u32 %v24, 7
  %v26 = vsub.s32 0, %v25
  %v27 = vrot.slane %v22, %v26
  %vm29 = vcmask 31744
  %v31 = vsel %vm29, %v20, 0
  %vm33 = vcmask 1043456
  %v35 = vsel %vm33, %v21, 0
  %37 = vmatprep.subr.mxu0 0.0
  %v38 = vand.u32 %v35, 4294901760
  %39 = vmatpush1.msra.mxu0 %v38
  %40 = vmatprep.subr.mxu0 0.0
  %41 = vmatpush1.msra.mxu0 0.0
  %42 = vmatprep.subr.mxu0 0.0
  %43 = vmatpush1.msra.mxu0 0.0
  %44 = vmatprep.subr.mxu0 0.0
  %45 = vmatpush1.msra.mxu0 0.0
  %46 = vmatprep.subr.mxu0 0.0
  %47 = vmatpush1.msra.mxu0 0.0
  %48 = vmatprep.subr.mxu0 0.0
  %49 = vmatpush1.msra.mxu0 0.0
  %50 = vmatprep.subr.mxu0 0.0
  %51 = vmatpush1.msra.mxu0 0.0
  %52 = vmatprep.subr.mxu0 0.0
  %53 = vmatpush1.msra.mxu0 0.0
  %54 = vmatprep.subr.mxu0 0.0
  %55 = vmatpush1.msra.mxu0 0.0
  %56 = vmatprep.subr.mxu0 0.0
  %57 = vmatpush1.msra.mxu0 0.0
  %58 = vmatprep.subr.mxu0 0.0
  %59 = vmatpush1.msra.mxu0 0.0
  %60 = vmatprep.subr.mxu0 0.0
  %61 = vmatpush1.msra.mxu0 0.0
  %62 = vmatprep.subr.mxu0 0.0
  %63 = vmatpush1.msra.mxu0 0.0
  %64 = vmatprep.subr.mxu0 0.0
  %65 = vmatpush1.msra.mxu0 0.0
  %66 = vmatprep.subr.mxu0 0.0
  %67 = vmatpush1.msra.mxu0 0.0
  %68 = vmatprep.subr.mxu0 0.0
  %69 = vmatpush1.msra.mxu0 0.0
  %70 = vmatprep.subr.mxu0 0.0
  %71 = vmatpush1.msra.mxu0 0.0
  %72 = vmatprep.subr.mxu0 0.0
  %73 = vmatpush1.msra.mxu0 0.0
  %74 = vmatprep.subr.mxu0 0.0
  %75 = vmatpush1.msra.mxu0 0.0
  %76 = vmatprep.subr.mxu0 0.0
  %77 = vmatpush1.msra.mxu0 0.0
  %78 = vmatprep.subr.mxu0 0.0
  %79 = vmatpush1.msra.mxu0 0.0
  %80 = vmatprep.subr.mxu0 0.0
  %81 = vmatpush1.msra.mxu0 0.0
  %82 = vmatprep.subr.mxu0 0.0
  %83 = vmatpush1.msra.mxu0 0.0
  %84 = vmatprep.subr.mxu0 0.0
  %85 = vmatpush1.msra.mxu0 0.0
  %86 = vmatprep.subr.mxu0 0.0
  %87 = vmatpush1.msra.mxu0 0.0
  %88 = vmatprep.subr.mxu0 0.0
  %89 = vmatpush1.msra.mxu0 0.0
  %90 = vmatprep.subr.mxu0 0.0
  %91 = vmatpush1.msra.mxu0 0.0
  %92 = vmatprep.subr.mxu0 0.0
  %93 = vmatpush1.msra.mxu0 0.0
  %94 = vmatprep.subr.mxu0 0.0
  %95 = vmatpush1.msra.mxu0 0.0
  %96 = vmatprep.subr.mxu0 0.0
  %97 = vmatpush1.msra.mxu0 0.0
  %98 = vmatprep.subr.mxu0 0.0
  %99 = vmatpush1.msra.mxu0 0.0
  %100 = vmatprep.subr.mxu0 0.0
  %101 = vmatpush1.msra.mxu0 0.0
  %102 = vmatprep.mubr.f32.mxu0 0.0
  %v103 = vand.u32 %v31, 4294901760
  %v104 = vsub.f32 %v31, %v103
  %v105 = vand.u32 %v104, 4294901760
  %v106 = vsub.f32 %v104, %v105
  %v107 = vand.u32 %v106, 4294901760
  %108 = vmatmul.mubr.f32.gmra.mrb[0].mxu0 %v107
  %v109 = vpop.f32.mrb[0].mxu0
  %v110 = vadd.f32 %v27, %v109
  %v111 = vpop.f32.mrb[0].mxu0
  %112 = vdwg.mxu0
  %113 = vmatprep.subr.mxu0 0.0
  %v114 = vand.u32 %v35, 4294901760
  %v115 = vsub.f32 %v35, %v114
  %v116 = vand.u32 %v115, 4294901760
  %v117 = vsub.f32 %v115, %v116
  %v118 = vand.u32 %v117, 4294901760
  %119 = vmatpush1.msra.mxu0 %v118
  %120 = vmatprep.subr.mxu0 0.0
  %121 = vmatpush1.msra.mxu0 0.0
  %122 = vmatprep.subr.mxu0 0.0
  %123 = vmatpush1.msra.mxu0 0.0
  %124 = vmatprep.subr.mxu0 0.0
  %125 = vmatpush1.msra.mxu0 0.0
  %126 = vmatprep.subr.mxu0 0.0
  %127 = vmatpush1.msra.mxu0 0.0
  %128 = vmatprep.subr.mxu0 0.0
  %129 = vmatpush1.msra.mxu0 0.0
  %130 = vmatprep.subr.mxu0 0.0
  %131 = vmatpush1.msra.mxu0 0.0
  %132 = vmatprep.subr.mxu0 0.0
  %133 = vmatpush1.msra.mxu0 0.0
  %134 = vmatprep.subr.mxu0 0.0
  %135 = vmatpush1.msra.mxu0 0.0
  %136 = vmatprep.subr.mxu0 0.0
  %137 = vmatpush1.msra.mxu0 0.0
  %138 = vmatprep.subr.mxu0 0.0
  %139 = vmatpush1.msra.mxu0 0.0
  %140 = vmatprep.subr.mxu0 0.0
  %141 = vmatpush1.msra.mxu0 0.0
  %142 = vmatprep.subr.mxu0 0.0
  %143 = vmatpush1.msra.mxu0 0.0
  %144 = vmatprep.subr.mxu0 0.0
  %145 = vmatpush1.msra.mxu0 0.0
  %146 = vmatprep.subr.mxu0 0.0
  %147 = vmatpush1.msra.mxu0 0.0
  %148 = vmatprep.subr.mxu0 0.0
  %149 = vmatpush1.msra.mxu0 0.0
  %150 = vmatprep.subr.mxu0 0.0
  %151 = vmatpush1.msra.mxu0 0.0
  %152 = vmatprep.subr.mxu0 0.0
  %153 = vmatpush1.msra.mxu0 0.0
  %154 = vmatprep.subr.mxu0 0.0
  %155 = vmatpush1.msra.mxu0 0.0
  %156 = vmatprep.subr.mxu0 0.0
  %157 = vmatpush1.msra.mxu0 0.0
  %158 = vmatprep.subr.mxu0 0.0
  %159 = vmatpush1.msra.mxu0 0.0
  %160 = vmatprep.subr.mxu0 0.0
  %161 = vmatpush1.msra.mxu0 0.0
  %162 = vmatprep.subr.mxu0 0.0
  %163 = vmatpush1.msra.mxu0 0.0
  %164 = vmatprep.subr.mxu0 0.0
  %165 = vmatpush1.msra.mxu0 0.0
  %166 = vmatprep.subr.mxu0 0.0
  %167 = vmatpush1.msra.mxu0 0.0
  %168 = vmatprep.subr.mxu0 0.0
  %169 = vmatpush1.msra.mxu0 0.0
  %170 = vmatprep.subr.mxu0 0.0
  %171 = vmatpush1.msra.mxu0 0.0
  %172 = vmatprep.subr.mxu0 0.0
  %173 = vmatpush1.msra.mxu0 0.0
  %174 = vmatprep.subr.mxu0 0.0
  %175 = vmatpush1.msra.mxu0 0.0
  %176 = vmatprep.subr.mxu0 0.0
  %177 = vmatpush1.msra.mxu0 0.0
  %178 = vmatprep.subr.mxu0 0.0
  %179 = vmatpush1.msra.mxu0 0.0
  %180 = vmatprep.subr.mxu0 0.0
  %181 = vmatpush1.msra.mxu0 0.0
  %182 = vmatprep.mubr.f32.mxu0 0.0
  %v183 = vand.u32 %v31, 4294901760
  %184 = vmatmul.mubr.f32.gmra.mrb[0].mxu0 %v183
  %v185 = vpop.f32.mrb[0].mxu0
  %v186 = vadd.f32 %v110, %v185
  %v187 = vpop.f32.mrb[0].mxu0
  %188 = vdwg.mxu0
  %189 = vmatprep.subr.mxu0 0.0
  %v190 = vand.u32 %v35, 4294901760
  %v191 = vsub.f32 %v35, %v190
  %192 = vmatpush1.msra.mxu0 %v191
  %193 = vmatprep.subr.mxu0 0.0
  %194 = vmatpush1.msra.mxu0 0.0
  %195 = vmatprep.subr.mxu0 0.0
  %196 = vmatpush1.msra.mxu0 0.0
  %197 = vmatprep.subr.mxu0 0.0
  %198 = vmatpush1.msra.mxu0 0.0
  %199 = vmatprep.subr.mxu0 0.0
  %200 = vmatpush1.msra.mxu0 0.0
  %201 = vmatprep.subr.mxu0 0.0
  %202 = vmatpush1.msra.mxu0 0.0
  %203 = vmatprep.subr.mxu0 0.0
  %204 = vmatpush1.msra.mxu0 0.0
  %205 = vmatprep.subr.mxu0 0.0
  %206 = vmatpush1.msra.mxu0 0.0
  %207 = vmatprep.subr.mxu0 0.0
  %208 = vmatpush1.msra.mxu0 0.0
  %209 = vmatprep.subr.mxu0 0.0
  %210 = vmatpush1.msra.mxu0 0.0
  %211 = vmatprep.subr.mxu0 0.0
  %212 = vmatpush1.msra.mxu0 0.0
  %213 = vmatprep.subr.mxu0 0.0
  %214 = vmatpush1.msra.mxu0 0.0
  %215 = vmatprep.subr.mxu0 0.0
  %216 = vmatpush1.msra.mxu0 0.0
  %217 = vmatprep.subr.mxu0 0.0
  %218 = vmatpush1.msra.mxu0 0.0
  %219 = vmatprep.subr.mxu0 0.0
  %220 = vmatpush1.msra.mxu0 0.0
  %221 = vmatprep.subr.mxu0 0.0
  %222 = vmatpush1.msra.mxu0 0.0
  %223 = vmatprep.subr.mxu0 0.0
  %224 = vmatpush1.msra.mxu0 0.0
  %225 = vmatprep.subr.mxu0 0.0
  %226 = vmatpush1.msra.mxu0 0.0
  %227 = vmatprep.subr.mxu0 0.0
  %228 = vmatpush1.msra.mxu0 0.0
  %229 = vmatprep.subr.mxu0 0.0
  %230 = vmatpush1.msra.mxu0 0.0
  %231 = vmatprep.subr.mxu0 0.0
  %232 = vmatpush1.msra.mxu0 0.0
  %233 = vmatprep.subr.mxu0 0.0
  %234 = vmatpush1.msra.mxu0 0.0
  %235 = vmatprep.subr.mxu0 0.0
  %236 = vmatpush1.msra.mxu0 0.0
  %237 = vmatprep.subr.mxu0 0.0
  %238 = vmatpush1.msra.mxu0 0.0
  %239 = vmatprep.subr.mxu0 0.0
  %240 = vmatpush1.msra.mxu0 0.0
  %241 = vmatprep.subr.mxu0 0.0
  %242 = vmatpush1.msra.mxu0 0.0
  %243 = vmatprep.subr.mxu0 0.0
  %244 = vmatpush1.msra.mxu0 0.0
  %245 = vmatprep.subr.mxu0 0.0
  %246 = vmatpush1.msra.mxu0 0.0
  %247 = vmatprep.subr.mxu0 0.0
  %248 = vmatpush1.msra.mxu0 0.0
  %249 = vmatprep.subr.mxu0 0.0
  %250 = vmatpush1.msra.mxu0 0.0
  %251 = vmatprep.subr.mxu0 0.0
  %252 = vmatpush1.msra.mxu0 0.0
  %253 = vmatprep.subr.mxu0 0.0
  %254 = vmatpush1.msra.mxu0 0.0
  %255 = vmatprep.mubr.f32.mxu0 0.0
  %v256 = vand.u32 %v31, 4294901760
  %v257 = vsub.f32 %v31, %v256
  %258 = vmatmul.mubr.f32.gmra.mrb[0].mxu0 %v257
  %v259 = vpop.f32.mrb[0].mxu0
  %v260 = vadd.f32 %v186, %v259
  %v261 = vpop.f32.mrb[0].mxu0
  %262 = vdwg.mxu0
  %263 = vmatprep.subr.mxu0 0.0
  %v264 = vand.u32 %v35, 4294901760
  %265 = vmatpush1.msra.mxu0 %v264
  %266 = vmatprep.subr.mxu0 0.0
  %267 = vmatpush1.msra.mxu0 0.0
  %268 = vmatprep.subr.mxu0 0.0
  %269 = vmatpush1.msra.mxu0 0.0
  %270 = vmatprep.subr.mxu0 0.0
  %271 = vmatpush1.msra.mxu0 0.0
  %272 = vmatprep.subr.mxu0 0.0
  %273 = vmatpush1.msra.mxu0 0.0
  %274 = vmatprep.subr.mxu0 0.0
  %275 = vmatpush1.msra.mxu0 0.0
  %276 = vmatprep.subr.mxu0 0.0
  %277 = vmatpush1.msra.mxu0 0.0
  %278 = vmatprep.subr.mxu0 0.0
  %279 = vmatpush1.msra.mxu0 0.0
  %280 = vmatprep.subr.mxu0 0.0
  %281 = vmatpush1.msra.mxu0 0.0
  %282 = vmatprep.subr.mxu0 0.0
  %283 = vmatpush1.msra.mxu0 0.0
  %284 = vmatprep.subr.mxu0 0.0
  %285 = vmatpush1.msra.mxu0 0.0
  %286 = vmatprep.subr.mxu0 0.0
  %287 = vmatpush1.msra.mxu0 0.0
  %288 = vmatprep.subr.mxu0 0.0
  %289 = vmatpush1.msra.mxu0 0.0
  %290 = vmatprep.subr.mxu0 0.0
  %291 = vmatpush1.msra.mxu0 0.0
  %292 = vmatprep.subr.mxu0 0.0
  %293 = vmatpush1.msra.mxu0 0.0
  %294 = vmatprep.subr.mxu0 0.0
  %295 = vmatpush1.msra.mxu0 0.0
  %296 = vmatprep.subr.mxu0 0.0
  %297 = vmatpush1.msra.mxu0 0.0
  %298 = vmatprep.subr.mxu0 0.0
  %299 = vmatpush1.msra.mxu0 0.0
  %300 = vmatprep.subr.mxu0 0.0
  %301 = vmatpush1.msra.mxu0 0.0
  %302 = vmatprep.subr.mxu0 0.0
  %303 = vmatpush1.msra.mxu0 0.0
  %304 = vmatprep.subr.mxu0 0.0
  %305 = vmatpush1.msra.mxu0 0.0
  %306 = vmatprep.subr.mxu0 0.0
  %307 = vmatpush1.msra.mxu0 0.0
  %308 = vmatprep.subr.mxu0 0.0
  %309 = vmatpush1.msra.mxu0 0.0
  %310 = vmatprep.subr.mxu0 0.0
  %311 = vmatpush1.msra.mxu0 0.0
  %312 = vmatprep.subr.mxu0 0.0
  %313 = vmatpush1.msra.mxu0 0.0
  %314 = vmatprep.subr.mxu0 0.0
  %315 = vmatpush1.msra.mxu0 0.0
  %316 = vmatprep.subr.mxu0 0.0
  %317 = vmatpush1.msra.mxu0 0.0
  %318 = vmatprep.subr.mxu0 0.0
  %319 = vmatpush1.msra.mxu0 0.0
  %320 = vmatprep.subr.mxu0 0.0
  %321 = vmatpush1.msra.mxu0 0.0
  %322 = vmatprep.subr.mxu0 0.0
  %323 = vmatpush1.msra.mxu0 0.0
  %324 = vmatprep.subr.mxu0 0.0
  %325 = vmatpush1.msra.mxu0 0.0
  %326 = vmatprep.subr.mxu0 0.0
  %327 = vmatpush1.msra.mxu0 0.0
  %328 = vmatprep.mubr.f32.mxu0 0.0
  %v329 = vand.u32 %v31, 4294901760
  %v330 = vsub.f32 %v31, %v329
  %v331 = vand.u32 %v330, 4294901760
  %332 = vmatmul.mubr.f32.gmra.mrb[0].mxu0 %v331
  %v333 = vpop.f32.mrb[0].mxu0
  %v334 = vadd.f32 %v260, %v333
  %v335 = vpop.f32.mrb[0].mxu0
  %336 = vdwg.mxu0
  %337 = vmatprep.subr.mxu0 0.0
  %v338 = vand.u32 %v35, 4294901760
  %v339 = vsub.f32 %v35, %v338
  %v340 = vand.u32 %v339, 4294901760
  %341 = vmatpush1.msra.mxu0 %v340
  %342 = vmatprep.subr.mxu0 0.0
  %343 = vmatpush1.msra.mxu0 0.0
  %344 = vmatprep.subr.mxu0 0.0
  %345 = vmatpush1.msra.mxu0 0.0
  %346 = vmatprep.subr.mxu0 0.0
  %347 = vmatpush1.msra.mxu0 0.0
  %348 = vmatprep.subr.mxu0 0.0
  %349 = vmatpush1.msra.mxu0 0.0
  %350 = vmatprep.subr.mxu0 0.0
  %351 = vmatpush1.msra.mxu0 0.0
  %352 = vmatprep.subr.mxu0 0.0
  %353 = vmatpush1.msra.mxu0 0.0
  %354 = vmatprep.subr.mxu0 0.0
  %355 = vmatpush1.msra.mxu0 0.0
  %356 = vmatprep.subr.mxu0 0.0
  %357 = vmatpush1.msra.mxu0 0.0
  %358 = vmatprep.subr.mxu0 0.0
  %359 = vmatpush1.msra.mxu0 0.0
  %360 = vmatprep.subr.mxu0 0.0
  %361 = vmatpush1.msra.mxu0 0.0
  %362 = vmatprep.subr.mxu0 0.0
  %363 = vmatpush1.msra.mxu0 0.0
  %364 = vmatprep.subr.mxu0 0.0
  %365 = vmatpush1.msra.mxu0 0.0
  %366 = vmatprep.subr.mxu0 0.0
  %367 = vmatpush1.msra.mxu0 0.0
  %368 = vmatprep.subr.mxu0 0.0
  %369 = vmatpush1.msra.mxu0 0.0
  %370 = vmatprep.subr.mxu0 0.0
  %371 = vmatpush1.msra.mxu0 0.0
  %372 = vmatprep.subr.mxu0 0.0
  %373 = vmatpush1.msra.mxu0 0.0
  %374 = vmatprep.subr.mxu0 0.0
  %375 = vmatpush1.msra.mxu0 0.0
  %376 = vmatprep.subr.mxu0 0.0
  %377 = vmatpush1.msra.mxu0 0.0
  %378 = vmatprep.subr.mxu0 0.0
  %379 = vmatpush1.msra.mxu0 0.0
  %380 = vmatprep.subr.mxu0 0.0
  %381 = vmatpush1.msra.mxu0 0.0
  %382 = vmatprep.subr.mxu0 0.0
  %383 = vmatpush1.msra.mxu0 0.0
  %384 = vmatprep.subr.mxu0 0.0
  %385 = vmatpush1.msra.mxu0 0.0
  %386 = vmatprep.subr.mxu0 0.0
  %387 = vmatpush1.msra.mxu0 0.0
  %388 = vmatprep.subr.mxu0 0.0
  %389 = vmatpush1.msra.mxu0 0.0
  %390 = vmatprep.subr.mxu0 0.0
  %391 = vmatpush1.msra.mxu0 0.0
  %392 = vmatprep.subr.mxu0 0.0
  %393 = vmatpush1.msra.mxu0 0.0
  %394 = vmatprep.subr.mxu0 0.0
  %395 = vmatpush1.msra.mxu0 0.0
  %396 = vmatprep.subr.mxu0 0.0
  %397 = vmatpush1.msra.mxu0 0.0
  %398 = vmatprep.subr.mxu0 0.0
  %399 = vmatpush1.msra.mxu0 0.0
  %400 = vmatprep.subr.mxu0 0.0
  %401 = vmatpush1.msra.mxu0 0.0
  %402 = vmatprep.subr.mxu0 0.0
  %403 = vmatpush1.msra.mxu0 0.0
  %404 = vmatprep.mubr.f32.mxu0 0.0
  %v405 = vand.u32 %v31, 4294901760
  %406 = vmatmul.mubr.f32.gmra.mrb[0].mxu0 %v405
  %v407 = vpop.f32.mrb[0].mxu0
  %v408 = vadd.f32 %v334, %v407
  %v409 = vpop.f32.mrb[0].mxu0
  %410 = vdwg.mxu0
  %411 = vmatprep.subr.mxu0 0.0
  %v412 = vand.u32 %v35, 4294901760
  %413 = vmatpush1.msra.mxu0 %v412
  %414 = vmatprep.subr.mxu0 0.0
  %415 = vmatpush1.msra.mxu0 0.0
  %416 = vmatprep.subr.mxu0 0.0
  %417 = vmatpush1.msra.mxu0 0.0
  %418 = vmatprep.subr.mxu0 0.0
  %419 = vmatpush1.msra.mxu0 0.0
  %420 = vmatprep.subr.mxu0 0.0
  %421 = vmatpush1.msra.mxu0 0.0
  %422 = vmatprep.subr.mxu0 0.0
  %423 = vmatpush1.msra.mxu0 0.0
  %424 = vmatprep.subr.mxu0 0.0
  %425 = vmatpush1.msra.mxu0 0.0
  %426 = vmatprep.subr.mxu0 0.0
  %427 = vmatpush1.msra.mxu0 0.0
  %428 = vmatprep.subr.mxu0 0.0
  %429 = vmatpush1.msra.mxu0 0.0
  %430 = vmatprep.subr.mxu0 0.0
  %431 = vmatpush1.msra.mxu0 0.0
  %432 = vmatprep.subr.mxu0 0.0
  %433 = vmatpush1.msra.mxu0 0.0
  %434 = vmatprep.subr.mxu0 0.0
  %435 = vmatpush1.msra.mxu0 0.0
  %436 = vmatprep.subr.mxu0 0.0
  %437 = vmatpush1.msra.mxu0 0.0
  %438 = vmatprep.subr.mxu0 0.0
  %439 = vmatpush1.msra.mxu0 0.0
  %440 = vmatprep.subr.mxu0 0.0
  %441 = vmatpush1.msra.mxu0 0.0
  %442 = vmatprep.subr.mxu0 0.0
  %443 = vmatpush1.msra.mxu0 0.0
  %444 = vmatprep.subr.mxu0 0.0
  %445 = vmatpush1.msra.mxu0 0.0
  %446 = vmatprep.subr.mxu0 0.0
  %447 = vmatpush1.msra.mxu0 0.0
  %448 = vmatprep.subr.mxu0 0.0
  %449 = vmatpush1.msra.mxu0 0.0
  %450 = vmatprep.subr.mxu0 0.0
  %451 = vmatpush1.msra.mxu0 0.0
  %452 = vmatprep.subr.mxu0 0.0
  %453 = vmatpush1.msra.mxu0 0.0
  %454 = vmatprep.subr.mxu0 0.0
  %455 = vmatpush1.msra.mxu0 0.0
  %456 = vmatprep.subr.mxu0 0.0
  %457 = vmatpush1.msra.mxu0 0.0
  %458 = vmatprep.subr.mxu0 0.0
  %459 = vmatpush1.msra.mxu0 0.0
  %460 = vmatprep.subr.mxu0 0.0
  %461 = vmatpush1.msra.mxu0 0.0
  %462 = vmatprep.subr.mxu0 0.0
  %463 = vmatpush1.msra.mxu0 0.0
  %464 = vmatprep.subr.mxu0 0.0
  %465 = vmatpush1.msra.mxu0 0.0
  %466 = vmatprep.subr.mxu0 0.0
  %467 = vmatpush1.msra.mxu0 0.0
  %468 = vmatprep.subr.mxu0 0.0
  %469 = vmatpush1.msra.mxu0 0.0
  %470 = vmatprep.subr.mxu0 0.0
  %471 = vmatpush1.msra.mxu0 0.0
  %472 = vmatprep.subr.mxu0 0.0
  %473 = vmatpush1.msra.mxu0 0.0
  %474 = vmatprep.subr.mxu0 0.0
  %475 = vmatpush1.msra.mxu0 0.0
  %476 = vmatprep.mubr.f32.mxu0 0.0
  %v477 = vand.u32 %v31, 4294901760
  %478 = vmatmul.mubr.f32.gmra.mrb[0].mxu0 %v477
  %v479 = vpop.f32.mrb[0].mxu0
  %v480 = vadd.f32 %v408, %v479
  %v481 = vpop.f32.mrb[0].mxu0
  %482 = vdwg.mxu0
  %v483 = vmax.f32 %v480, 0.0
  %v484 = vld [vmem:[%s3] sm:$0xff]
  %v485 = vld [vmem:[%s3 + $0x8] sm:$0xff]
  %v486 = vld [vmem:[%s3 + $0x10] sm:$0xff]
  %v487 = vld [vmem:[%s3 + $0x18] sm:$0xff]
  %v488 = vld [vmem:[%s3 + $0x20] sm:$0xff]
  %v489 = vld [vmem:[%s3 + $0x28] sm:$0xff]
  %v490 = vld [vmem:[%s3 + $0x30] sm:$0xff]
  %v491 = vld [vmem:[%s3 + $0x38] sm:$0xff]
  %v492 = vld [vmem:[%s3 + $0x40] sm:$0xff]
  %v493 = vld [vmem:[%s3 + $0x48] sm:$0xff]
  %v494 = vld [vmem:[%s3 + $0x50] sm:$0xff]
  %v495 = vld [vmem:[%s3 + $0x58] sm:$0xff]
  %v496 = vld [vmem:[%s3 + $0x60] sm:$0xff]
  %v497 = vld [vmem:[%s3 + $0x68] sm:$0xff]
  %v498 = vld [vmem:[%s3 + $0x70] sm:$0xff]
  %v499 = vld [vmem:[%s3 + $0x78] sm:$0xff]
  %v500 = vld [vmem:[%s4] sm:$0x1]
  %v502 = vlaneseq
  %v503 = vshrl.u32 %v502, 7
  %v504 = vsub.s32 0, %v503
  %v505 = vrot.slane %v500, %v504
  %507 = vmatprep.subr.mxu0 0.0
  %v508 = vand.u32 %v484, 4294901760
  %509 = vmatpush1.msra.mxu0 %v508
  %510 = vmatprep.subr.mxu0 0.0
  %v511 = vand.u32 %v485, 4294901760
  %512 = vmatpush1.msra.mxu0 %v511
  %513 = vmatprep.subr.mxu0 0.0
  %v514 = vand.u32 %v486, 4294901760
  %515 = vmatpush1.msra.mxu0 %v514
  %516 = vmatprep.subr.mxu0 0.0
  %v517 = vand.u32 %v487, 4294901760
  %518 = vmatpush1.msra.mxu0 %v517
  %519 = vmatprep.subr.mxu0 0.0
  %v520 = vand.u32 %v488, 4294901760
  %521 = vmatpush1.msra.mxu0 %v520
  %522 = vmatprep.subr.mxu0 0.0
  %v523 = vand.u32 %v489, 4294901760
  %524 = vmatpush1.msra.mxu0 %v523
  %525 = vmatprep.subr.mxu0 0.0
  %v526 = vand.u32 %v490, 4294901760
  %527 = vmatpush1.msra.mxu0 %v526
  %528 = vmatprep.subr.mxu0 0.0
  %v529 = vand.u32 %v491, 4294901760
  %530 = vmatpush1.msra.mxu0 %v529
  %531 = vmatprep.subr.mxu0 0.0
  %v532 = vand.u32 %v492, 4294901760
  %533 = vmatpush1.msra.mxu0 %v532
  %534 = vmatprep.subr.mxu0 0.0
  %v535 = vand.u32 %v493, 4294901760
  %536 = vmatpush1.msra.mxu0 %v535
  %537 = vmatprep.subr.mxu0 0.0
  %v538 = vand.u32 %v494, 4294901760
  %539 = vmatpush1.msra.mxu0 %v538
  %540 = vmatprep.subr.mxu0 0.0
  %v541 = vand.u32 %v495, 4294901760
  %542 = vmatpush1.msra.mxu0 %v541
  %543 = vmatprep.subr.mxu0 0.0
  %v544 = vand.u32 %v496, 4294901760
  %545 = vmatpush1.msra.mxu0 %v544
  %546 = vmatprep.subr.mxu0 0.0
  %v547 = vand.u32 %v497, 4294901760
  %548 = vmatpush1.msra.mxu0 %v547
  %549 = vmatprep.subr.mxu0 0.0
  %v550 = vand.u32 %v498, 4294901760
  %551 = vmatpush1.msra.mxu0 %v550
  %552 = vmatprep.subr.mxu0 0.0
  %v553 = vand.u32 %v499, 4294901760
  %554 = vmatpush1.msra.mxu0 %v553
  %555 = vmatprep.subr.mxu0 0.0
  %556 = vmatpush1.msra.mxu0 0.0
  %557 = vmatprep.subr.mxu0 0.0
  %558 = vmatpush1.msra.mxu0 0.0
  %559 = vmatprep.subr.mxu0 0.0
  %560 = vmatpush1.msra.mxu0 0.0
  %561 = vmatprep.subr.mxu0 0.0
  %562 = vmatpush1.msra.mxu0 0.0
  %563 = vmatprep.subr.mxu0 0.0
  %564 = vmatpush1.msra.mxu0 0.0
  %565 = vmatprep.subr.mxu0 0.0
  %566 = vmatpush1.msra.mxu0 0.0
  %567 = vmatprep.subr.mxu0 0.0
  %568 = vmatpush1.msra.mxu0 0.0
  %569 = vmatprep.subr.mxu0 0.0
  %570 = vmatpush1.msra.mxu0 0.0
  %571 = vmatprep.subr.mxu0 0.0
  %572 = vmatpush1.msra.mxu0 0.0
  %573 = vmatprep.subr.mxu0 0.0
  %574 = vmatpush1.msra.mxu0 0.0
  %575 = vmatprep.subr.mxu0 0.0
  %576 = vmatpush1.msra.mxu0 0.0
  %577 = vmatprep.subr.mxu0 0.0
  %578 = vmatpush1.msra.mxu0 0.0
  %579 = vmatprep.subr.mxu0 0.0
  %580 = vmatpush1.msra.mxu0 0.0
  %581 = vmatprep.subr.mxu0 0.0
  %582 = vmatpush1.msra.mxu0 0.0
  %583 = vmatprep.subr.mxu0 0.0
  %584 = vmatpush1.msra.mxu0 0.0
  %585 = vmatprep.subr.mxu0 0.0
  %586 = vmatpush1.msra.mxu0 0.0
  %587 = vmatprep.mubr.f32.mxu0 0.0
  %v588 = vand.u32 %v483, 4294901760
  %v589 = vsub.f32 %v483, %v588
  %v590 = vand.u32 %v589, 4294901760
  %v591 = vsub.f32 %v589, %v590
  %v592 = vand.u32 %v591, 4294901760
  %593 = vmatmul.mubr.f32.gmra.mrb[0].mxu0 %v592
  %v594 = vpop.f32.mrb[0].mxu0
  %v595 = vadd.f32 %v505, %v594
  %v596 = vpop.f32.mrb[0].mxu0
  %597 = vdwg.mxu0
  %598 = vmatprep.subr.mxu0 0.0
  %v599 = vand.u32 %v484, 4294901760
  %v600 = vsub.f32 %v484, %v599
  %v601 = vand.u32 %v600, 4294901760
  %v602 = vsub.f32 %v600, %v601
  %v603 = vand.u32 %v602, 4294901760
  %604 = vmatpush1.msra.mxu0 %v603
  %605 = vmatprep.subr.mxu0 0.0
  %v606 = vand.u32 %v485, 4294901760
  %v607 = vsub.f32 %v485, %v606
  %v608 = vand.u32 %v607, 4294901760
  %v609 = vsub.f32 %v607, %v608
  %v610 = vand.u32 %v609, 4294901760
  %611 = vmatpush1.msra.mxu0 %v610
  %612 = vmatprep.subr.mxu0 0.0
  %v613 = vand.u32 %v486, 4294901760
  %v614 = vsub.f32 %v486, %v613
  %v615 = vand.u32 %v614, 4294901760
  %v616 = vsub.f32 %v614, %v615
  %v617 = vand.u32 %v616, 4294901760
  %618 = vmatpush1.msra.mxu0 %v617
  %619 = vmatprep.subr.mxu0 0.0
  %v620 = vand.u32 %v487, 4294901760
  %v621 = vsub.f32 %v487, %v620
  %v622 = vand.u32 %v621, 4294901760
  %v623 = vsub.f32 %v621, %v622
  %v624 = vand.u32 %v623, 4294901760
  %625 = vmatpush1.msra.mxu0 %v624
  %626 = vmatprep.subr.mxu0 0.0
  %v627 = vand.u32 %v488, 4294901760
  %v628 = vsub.f32 %v488, %v627
  %v629 = vand.u32 %v628, 4294901760
  %v630 = vsub.f32 %v628, %v629
  %v631 = vand.u32 %v630, 4294901760
  %632 = vmatpush1.msra.mxu0 %v631
  %633 = vmatprep.subr.mxu0 0.0
  %v634 = vand.u32 %v489, 4294901760
  %v635 = vsub.f32 %v489, %v634
  %v636 = vand.u32 %v635, 4294901760
  %v637 = vsub.f32 %v635, %v636
  %v638 = vand.u32 %v637, 4294901760
  %639 = vmatpush1.msra.mxu0 %v638
  %640 = vmatprep.subr.mxu0 0.0
  %v641 = vand.u32 %v490, 4294901760
  %v642 = vsub.f32 %v490, %v641
  %v643 = vand.u32 %v642, 4294901760
  %v644 = vsub.f32 %v642, %v643
  %v645 = vand.u32 %v644, 4294901760
  %646 = vmatpush1.msra.mxu0 %v645
  %647 = vmatprep.subr.mxu0 0.0
  %v648 = vand.u32 %v491, 4294901760
  %v649 = vsub.f32 %v491, %v648
  %v650 = vand.u32 %v649, 4294901760
  %v651 = vsub.f32 %v649, %v650
  %v652 = vand.u32 %v651, 4294901760
  %653 = vmatpush1.msra.mxu0 %v652
  %654 = vmatprep.subr.mxu0 0.0
  %v655 = vand.u32 %v492, 4294901760
  %v656 = vsub.f32 %v492, %v655
  %v657 = vand.u32 %v656, 4294901760
  %v658 = vsub.f32 %v656, %v657
  %v659 = vand.u32 %v658, 4294901760
  %660 = vmatpush1.msra.mxu0 %v659
  %661 = vmatprep.subr.mxu0 0.0
  %v662 = vand.u32 %v493, 4294901760
  %v663 = vsub.f32 %v493, %v662
  %v664 = vand.u32 %v663, 4294901760
  %v665 = vsub.f32 %v663, %v664
  %v666 = vand.u32 %v665, 4294901760
  %667 = vmatpush1.msra.mxu0 %v666
  %668 = vmatprep.subr.mxu0 0.0
  %v669 = vand.u32 %v494, 4294901760
  %v670 = vsub.f32 %v494, %v669
  %v671 = vand.u32 %v670, 4294901760
  %v672 = vsub.f32 %v670, %v671
  %v673 = vand.u32 %v672, 4294901760
  %674 = vmatpush1.msra.mxu0 %v673
  %675 = vmatprep.subr.mxu0 0.0
  %v676 = vand.u32 %v495, 4294901760
  %v677 = vsub.f32 %v495, %v676
  %v678 = vand.u32 %v677, 4294901760
  %v679 = vsub.f32 %v677, %v678
  %v680 = vand.u32 %v679, 4294901760
  %681 = vmatpush1.msra.mxu0 %v680
  %682 = vmatprep.subr.mxu0 0.0
  %v683 = vand.u32 %v496, 4294901760
  %v684 = vsub.f32 %v496, %v683
  %v685 = vand.u32 %v684, 4294901760
  %v686 = vsub.f32 %v684, %v685
  %v687 = vand.u32 %v686, 4294901760
  %688 = vmatpush1.msra.mxu0 %v687
  %689 = vmatprep.subr.mxu0 0.0
  %v690 = vand.u32 %v497, 4294901760
  %v691 = vsub.f32 %v497, %v690
  %v692 = vand.u32 %v691, 4294901760
  %v693 = vsub.f32 %v691, %v692
  %v694 = vand.u32 %v693, 4294901760
  %695 = vmatpush1.msra.mxu0 %v694
  %696 = vmatprep.subr.mxu0 0.0
  %v697 = vand.u32 %v498, 4294901760
  %v698 = vsub.f32 %v498, %v697
  %v699 = vand.u32 %v698, 4294901760
  %v700 = vsub.f32 %v698, %v699
  %v701 = vand.u32 %v700, 4294901760
  %702 = vmatpush1.msra.mxu0 %v701
  %703 = vmatprep.subr.mxu0 0.0
  %v704 = vand.u32 %v499, 4294901760
  %v705 = vsub.f32 %v499, %v704
  %v706 = vand.u32 %v705, 4294901760
  %v707 = vsub.f32 %v705, %v706
  %v708 = vand.u32 %v707, 4294901760
  %709 = vmatpush1.msra.mxu0 %v708
  %710 = vmatprep.subr.mxu0 0.0
  %711 = vmatpush1.msra.mxu0 0.0
  %712 = vmatprep.subr.mxu0 0.0
  %713 = vmatpush1.msra.mxu0 0.0
  %714 = vmatprep.subr.mxu0 0.0
  %715 = vmatpush1.msra.mxu0 0.0
  %716 = vmatprep.subr.mxu0 0.0
  %717 = vmatpush1.msra.mxu0 0.0
  %718 = vmatprep.subr.mxu0 0.0
  %719 = vmatpush1.msra.mxu0 0.0
  %720 = vmatprep.subr.mxu0 0.0
  %721 = vmatpush1.msra.mxu0 0.0
  %722 = vmatprep.subr.mxu0 0.0
  %723 = vmatpush1.msra.mxu0 0.0
  %724 = vmatprep.subr.mxu0 0.0
  %725 = vmatpush1.msra.mxu0 0.0
  %726 = vmatprep.subr.mxu0 0.0
  %727 = vmatpush1.msra.mxu0 0.0
  %728 = vmatprep.subr.mxu0 0.0
  %729 = vmatpush1.msra.mxu0 0.0
  %730 = vmatprep.subr.mxu0 0.0
  %731 = vmatpush1.msra.mxu0 0.0
  %732 = vmatprep.subr.mxu0 0.0
  %733 = vmatpush1.msra.mxu0 0.0
  %734 = vmatprep.subr.mxu0 0.0
  %735 = vmatpush1.msra.mxu0 0.0
  %736 = vmatprep.subr.mxu0 0.0
  %737 = vmatpush1.msra.mxu0 0.0
  %738 = vmatprep.subr.mxu0 0.0
  %739 = vmatpush1.msra.mxu0 0.0
  %740 = vmatprep.subr.mxu0 0.0
  %741 = vmatpush1.msra.mxu0 0.0
  %742 = vmatprep.mubr.f32.mxu0 0.0
  %v743 = vand.u32 %v483, 4294901760
  %744 = vmatmul.mubr.f32.gmra.mrb[0].mxu0 %v743
  %v745 = vpop.f32.mrb[0].mxu0
  %v746 = vadd.f32 %v595, %v745
  %v747 = vpop.f32.mrb[0].mxu0
  %748 = vdwg.mxu0
  %749 = vmatprep.subr.mxu0 0.0
  %v750 = vand.u32 %v484, 4294901760
  %v751 = vsub.f32 %v484, %v750
  %752 = vmatpush1.msra.mxu0 %v751
  %753 = vmatprep.subr.mxu0 0.0
  %v754 = vand.u32 %v485, 4294901760
  %v755 = vsub.f32 %v485, %v754
  %756 = vmatpush1.msra.mxu0 %v755
  %757 = vmatprep.subr.mxu0 0.0
  %v758 = vand.u32 %v486, 4294901760
  %v759 = vsub.f32 %v486, %v758
  %760 = vmatpush1.msra.mxu0 %v759
  %761 = vmatprep.subr.mxu0 0.0
  %v762 = vand.u32 %v487, 4294901760
  %v763 = vsub.f32 %v487, %v762
  %764 = vmatpush1.msra.mxu0 %v763
  %765 = vmatprep.subr.mxu0 0.0
  %v766 = vand.u32 %v488, 4294901760
  %v767 = vsub.f32 %v488, %v766
  %768 = vmatpush1.msra.mxu0 %v767
  %769 = vmatprep.subr.mxu0 0.0
  %v770 = vand.u32 %v489, 4294901760
  %v771 = vsub.f32 %v489, %v770
  %772 = vmatpush1.msra.mxu0 %v771
  %773 = vmatprep.subr.mxu0 0.0
  %v774 = vand.u32 %v490, 4294901760
  %v775 = vsub.f32 %v490, %v774
  %776 = vmatpush1.msra.mxu0 %v775
  %777 = vmatprep.subr.mxu0 0.0
  %v778 = vand.u32 %v491, 4294901760
  %v779 = vsub.f32 %v491, %v778
  %780 = vmatpush1.msra.mxu0 %v779
  %781 = vmatprep.subr.mxu0 0.0
  %v782 = vand.u32 %v492, 4294901760
  %v783 = vsub.f32 %v492, %v782
  %784 = vmatpush1.msra.mxu0 %v783
  %785 = vmatprep.subr.mxu0 0.0
  %v786 = vand.u32 %v493, 4294901760
  %v787 = vsub.f32 %v493, %v786
  %788 = vmatpush1.msra.mxu0 %v787
  %789 = vmatprep.subr.mxu0 0.0
  %v790 = vand.u32 %v494, 4294901760
  %v791 = vsub.f32 %v494, %v790
  %792 = vmatpush1.msra.mxu0 %v791
  %793 = vmatprep.subr.mxu0 0.0
  %v794 = vand.u32 %v495, 4294901760
  %v795 = vsub.f32 %v495, %v794
  %796 = vmatpush1.msra.mxu0 %v795
  %797 = vmatprep.subr.mxu0 0.0
  %v798 = vand.u32 %v496, 4294901760
  %v799 = vsub.f32 %v496, %v798
  %800 = vmatpush1.msra.mxu0 %v799
  %801 = vmatprep.subr.mxu0 0.0
  %v802 = vand.u32 %v497, 4294901760
  %v803 = vsub.f32 %v497, %v802
  %804 = vmatpush1.msra.mxu0 %v803
  %805 = vmatprep.subr.mxu0 0.0
  %v806 = vand.u32 %v498, 4294901760
  %v807 = vsub.f32 %v498, %v806
  %808 = vmatpush1.msra.mxu0 %v807
  %809 = vmatprep.subr.mxu0 0.0
  %v810 = vand.u32 %v499, 4294901760
  %v811 = vsub.f32 %v499, %v810
  %812 = vmatpush1.msra.mxu0 %v811
  %813 = vmatprep.subr.mxu0 0.0
  %814 = vmatpush1.msra.mxu0 0.0
  %815 = vmatprep.subr.mxu0 0.0
  %816 = vmatpush1.msra.mxu0 0.0
  %817 = vmatprep.subr.mxu0 0.0
  %818 = vmatpush1.msra.mxu0 0.0
  %819 = vmatprep.subr.mxu0 0.0
  %820 = vmatpush1.msra.mxu0 0.0
  %821 = vmatprep.subr.mxu0 0.0
  %822 = vmatpush1.msra.mxu0 0.0
  %823 = vmatprep.subr.mxu0 0.0
  %824 = vmatpush1.msra.mxu0 0.0
  %825 = vmatprep.subr.mxu0 0.0
  %826 = vmatpush1.msra.mxu0 0.0
  %827 = vmatprep.subr.mxu0 0.0
  %828 = vmatpush1.msra.mxu0 0.0
  %829 = vmatprep.subr.mxu0 0.0
  %830 = vmatpush1.msra.mxu0 0.0
  %831 = vmatprep.subr.mxu0 0.0
  %832 = vmatpush1.msra.mxu0 0.0
  %833 = vmatprep.subr.mxu0 0.0
  %834 = vmatpush1.msra.mxu0 0.0
  %835 = vmatprep.subr.mxu0 0.0
  %836 = vmatpush1.msra.mxu0 0.0
  %837 = vmatprep.subr.mxu0 0.0
  %838 = vmatpush1.msra.mxu0 0.0
  %839 = vmatprep.subr.mxu0 0.0
  %840 = vmatpush1.msra.mxu0 0.0
  %841 = vmatprep.subr.mxu0 0.0
  %842 = vmatpush1.msra.mxu0 0.0
  %843 = vmatprep.subr.mxu0 0.0
  %844 = vmatpush1.msra.mxu0 0.0
  %845 = vmatprep.mubr.f32.mxu0 0.0
  %v846 = vand.u32 %v483, 4294901760
  %v847 = vsub.f32 %v483, %v846
  %848 = vmatmul.mubr.f32.gmra.mrb[0].mxu0 %v847
  %v849 = vpop.f32.mrb[0].mxu0
  %v850 = vadd.f32 %v746, %v849
  %v851 = vpop.f32.mrb[0].mxu0
  %852 = vdwg.mxu0
  %853 = vmatprep.subr.mxu0 0.0
  %v854 = vand.u32 %v484, 4294901760
  %855 = vmatpush1.msra.mxu0 %v854
  %856 = vmatprep.subr.mxu0 0.0
  %v857 = vand.u32 %v485, 4294901760
  %858 = vmatpush1.msra.mxu0 %v857
  %859 = vmatprep.subr.mxu0 0.0
  %v860 = vand.u32 %v486, 4294901760
  %861 = vmatpush1.msra.mxu0 %v860
  %862 = vmatprep.subr.mxu0 0.0
  %v863 = vand.u32 %v487, 4294901760
  %864 = vmatpush1.msra.mxu0 %v863
  %865 = vmatprep.subr.mxu0 0.0
  %v866 = vand.u32 %v488, 4294901760
  %867 = vmatpush1.msra.mxu0 %v866
  %868 = vmatprep.subr.mxu0 0.0
  %v869 = vand.u32 %v489, 4294901760
  %870 = vmatpush1.msra.mxu0 %v869
  %871 = vmatprep.subr.mxu0 0.0
  %v872 = vand.u32 %v490, 4294901760
  %873 = vmatpush1.msra.mxu0 %v872
  %874 = vmatprep.subr.mxu0 0.0
  %v875 = vand.u32 %v491, 4294901760
  %876 = vmatpush1.msra.mxu0 %v875
  %877 = vmatprep.subr.mxu0 0.0
  %v878 = vand.u32 %v492, 4294901760
  %879 = vmatpush1.msra.mxu0 %v878
  %880 = vmatprep.subr.mxu0 0.0
  %v881 = vand.u32 %v493, 4294901760
  %882 = vmatpush1.msra.mxu0 %v881
  %883 = vmatprep.subr.mxu0 0.0
  %v884 = vand.u32 %v494, 4294901760
  %885 = vmatpush1.msra.mxu0 %v884
  %886 = vmatprep.subr.mxu0 0.0
  %v887 = vand.u32 %v495, 4294901760
  %888 = vmatpush1.msra.mxu0 %v887
  %889 = vmatprep.subr.mxu0 0.0
  %v890 = vand.u32 %v496, 4294901760
  %891 = vmatpush1.msra.mxu0 %v890
  %892 = vmatprep.subr.mxu0 0.0
  %v893 = vand.u32 %v497, 4294901760
  %894 = vmatpush1.msra.mxu0 %v893
  %895 = vmatprep.subr.mxu0 0.0
  %v896 = vand.u32 %v498, 4294901760
  %897 = vmatpush1.msra.mxu0 %v896
  %898 = vmatprep.subr.mxu0 0.0
  %v899 = vand.u32 %v499, 4294901760
  %900 = vmatpush1.msra.mxu0 %v899
  %901 = vmatprep.subr.mxu0 0.0
  %902 = vmatpush1.msra.mxu0 0.0
  %903 = vmatprep.subr.mxu0 0.0
  %904 = vmatpush1.msra.mxu0 0.0
  %905 = vmatprep.subr.mxu0 0.0
  %906 = vmatpush1.msra.mxu0 0.0
  %907 = vmatprep.subr.mxu0 0.0
  %908 = vmatpush1.msra.mxu0 0.0
  %909 = vmatprep.subr.mxu0 0.0
  %910 = vmatpush1.msra.mxu0 0.0
  %911 = vmatprep.subr.mxu0 0.0
  %912 = vmatpush1.msra.mxu0 0.0
  %913 = vmatprep.subr.mxu0 0.0
  %914 = vmatpush1.msra.mxu0 0.0
  %915 = vmatprep.subr.mxu0 0.0
  %916 = vmatpush1.msra.mxu0 0.0
  %917 = vmatprep.subr.mxu0 0.0
  %918 = vmatpush1.msra.mxu0 0.0
  %919 = vmatprep.subr.mxu0 0.0
  %920 = vmatpush1.msra.mxu0 0.0
  %921 = vmatprep.subr.mxu0 0.0
  %922 = vmatpush1.msra.mxu0 0.0
  %923 = vmatprep.subr.mxu0 0.0
  %924 = vmatpush1.msra.mxu0 0.0
  %925 = vmatprep.subr.mxu0 0.0
  %926 = vmatpush1.msra.mxu0 0.0
  %927 = vmatprep.subr.mxu0 0.0
  %928 = vmatpush1.msra.mxu0 0.0
  %929 = vmatprep.subr.mxu0 0.0
  %930 = vmatpush1.msra.mxu0 0.0
  %931 = vmatprep.subr.mxu0 0.0
  %932 = vmatpush1.msra.mxu0 0.0
  %933 = vmatprep.mubr.f32.mxu0 0.0
  %v934 = vand.u32 %v483, 4294901760
  %v935 = vsub.f32 %v483, %v934
  %v936 = vand.u32 %v935, 4294901760
  %937 = vmatmul.mubr.f32.gmra.mrb[0].mxu0 %v936
  %v938 = vpop.f32.mrb[0].mxu0
  %v939 = vadd.f32 %v850, %v938
  %v940 = vpop.f32.mrb[0].mxu0
  %941 = vdwg.mxu0
  %942 = vmatprep.subr.mxu0 0.0
  %v943 = vand.u32 %v484, 4294901760
  %v944 = vsub.f32 %v484, %v943
  %v945 = vand.u32 %v944, 4294901760
  %946 = vmatpush1.msra.mxu0 %v945
  %947 = vmatprep.subr.mxu0 0.0
  %v948 = vand.u32 %v485, 4294901760
  %v949 = vsub.f32 %v485, %v948
  %v950 = vand.u32 %v949, 4294901760
  %951 = vmatpush1.msra.mxu0 %v950
  %952 = vmatprep.subr.mxu0 0.0
  %v953 = vand.u32 %v486, 4294901760
  %v954 = vsub.f32 %v486, %v953
  %v955 = vand.u32 %v954, 4294901760
  %956 = vmatpush1.msra.mxu0 %v955
  %957 = vmatprep.subr.mxu0 0.0
  %v958 = vand.u32 %v487, 4294901760
  %v959 = vsub.f32 %v487, %v958
  %v960 = vand.u32 %v959, 4294901760
  %961 = vmatpush1.msra.mxu0 %v960
  %962 = vmatprep.subr.mxu0 0.0
  %v963 = vand.u32 %v488, 4294901760
  %v964 = vsub.f32 %v488, %v963
  %v965 = vand.u32 %v964, 4294901760
  %966 = vmatpush1.msra.mxu0 %v965
  %967 = vmatprep.subr.mxu0 0.0
  %v968 = vand.u32 %v489, 4294901760
  %v969 = vsub.f32 %v489, %v968
  %v970 = vand.u32 %v969, 4294901760
  %971 = vmatpush1.msra.mxu0 %v970
  %972 = vmatprep.subr.mxu0 0.0
  %v973 = vand.u32 %v490, 4294901760
  %v974 = vsub.f32 %v490, %v973
  %v975 = vand.u32 %v974, 4294901760
  %976 = vmatpush1.msra.mxu0 %v975
  %977 = vmatprep.subr.mxu0 0.0
  %v978 = vand.u32 %v491, 4294901760
  %v979 = vsub.f32 %v491, %v978
  %v980 = vand.u32 %v979, 4294901760
  %981 = vmatpush1.msra.mxu0 %v980
  %982 = vmatprep.subr.mxu0 0.0
  %v983 = vand.u32 %v492, 4294901760
  %v984 = vsub.f32 %v492, %v983
  %v985 = vand.u32 %v984, 4294901760
  %986 = vmatpush1.msra.mxu0 %v985
  %987 = vmatprep.subr.mxu0 0.0
  %v988 = vand.u32 %v493, 4294901760
  %v989 = vsub.f32 %v493, %v988
  %v990 = vand.u32 %v989, 4294901760
  %991 = vmatpush1.msra.mxu0 %v990
  %992 = vmatprep.subr.mxu0 0.0
  %v993 = vand.u32 %v494, 4294901760
  %v994 = vsub.f32 %v494, %v993
  %v995 = vand.u32 %v994, 4294901760
  %996 = vmatpush1.msra.mxu0 %v995
  %997 = vmatprep.subr.mxu0 0.0
  %v998 = vand.u32 %v495, 4294901760
  %v999 = vsub.f32 %v495, %v998
  %v1000 = vand.u32 %v999, 4294901760
  %1001 = vmatpush1.msra.mxu0 %v1000
  %1002 = vmatprep.subr.mxu0 0.0
  %v1003 = vand.u32 %v496, 4294901760
  %v1004 = vsub.f32 %v496, %v1003
  %v1005 = vand.u32 %v1004, 4294901760
  %1006 = vmatpush1.msra.mxu0 %v1005
  %1007 = vmatprep.subr.mxu0 0.0
  %v1008 = vand.u32 %v497, 4294901760
  %v1009 = vsub.f32 %v497, %v1008
  %v1010 = vand.u32 %v1009, 4294901760
  %1011 = vmatpush1.msra.mxu0 %v1010
  %1012 = vmatprep.subr.mxu0 0.0
  %v1013 = vand.u32 %v498, 4294901760
  %v1014 = vsub.f32 %v498, %v1013
  %v1015 = vand.u32 %v1014, 4294901760
  %1016 = vmatpush1.msra.mxu0 %v1015
  %1017 = vmatprep.subr.mxu0 0.0
  %v1018 = vand.u32 %v499, 4294901760
  %v1019 = vsub.f32 %v499, %v1018
  %v1020 = vand.u32 %v1019, 4294901760
  %1021 = vmatpush1.msra.mxu0 %v1020
  %1022 = vmatprep.subr.mxu0 0.0
  %1023 = vmatpush1.msra.mxu0 0.0
  %1024 = vmatprep.subr.mxu0 0.0
  %1025 = vmatpush1.msra.mxu0 0.0
  %1026 = vmatprep.subr.mxu0 0.0
  %1027 = vmatpush1.msra.mxu0 0.0
  %1028 = vmatprep.subr.mxu0 0.0
  %1029 = vmatpush1.msra.mxu0 0.0
  %1030 = vmatprep.subr.mxu0 0.0
  %1031 = vmatpush1.msra.mxu0 0.0
  %1032 = vmatprep.subr.mxu0 0.0
  %1033 = vmatpush1.msra.mxu0 0.0
  %1034 = vmatprep.subr.mxu0 0.0
  %1035 = vmatpush1.msra.mxu0 0.0
  %1036 = vmatprep.subr.mxu0 0.0
  %1037 = vmatpush1.msra.mxu0 0.0
  %1038 = vmatprep.subr.mxu0 0.0
  %1039 = vmatpush1.msra.mxu0 0.0
  %1040 = vmatprep.subr.mxu0 0.0
  %1041 = vmatpush1.msra.mxu0 0.0
  %1042 = vmatprep.subr.mxu0 0.0
  %1043 = vmatpush1.msra.mxu0 0.0
  %1044 = vmatprep.subr.mxu0 0.0
  %1045 = vmatpush1.msra.mxu0 0.0
  %1046 = vmatprep.subr.mxu0 0.0
  %1047 = vmatpush1.msra.mxu0 0.0
  %1048 = vmatprep.subr.mxu0 0.0
  %1049 = vmatpush1.msra.mxu0 0.0
  %1050 = vmatprep.subr.mxu0 0.0
  %1051 = vmatpush1.msra.mxu0 0.0
  %1052 = vmatprep.subr.mxu0 0.0
  %1053 = vmatpush1.msra.mxu0 0.0
  %1054 = vmatprep.mubr.f32.mxu0 0.0
  %v1055 = vand.u32 %v483, 4294901760
  %1056 = vmatmul.mubr.f32.gmra.mrb[0].mxu0 %v1055
  %v1057 = vpop.f32.mrb[0].mxu0
  %v1058 = vadd.f32 %v939, %v1057
  %v1059 = vpop.f32.mrb[0].mxu0
  %1060 = vdwg.mxu0
  %1061 = vmatprep.subr.mxu0 0.0
  %v1062 = vand.u32 %v484, 4294901760
  %1063 = vmatpush1.msra.mxu0 %v1062
  %1064 = vmatprep.subr.mxu0 0.0
  %v1065 = vand.u32 %v485, 4294901760
  %1066 = vmatpush1.msra.mxu0 %v1065
  %1067 = vmatprep.subr.mxu0 0.0
  %v1068 = vand.u32 %v486, 4294901760
  %1069 = vmatpush1.msra.mxu0 %v1068
  %1070 = vmatprep.subr.mxu0 0.0
  %v1071 = vand.u32 %v487, 4294901760
  %1072 = vmatpush1.msra.mxu0 %v1071
  %1073 = vmatprep.subr.mxu0 0.0
  %v1074 = vand.u32 %v488, 4294901760
  %1075 = vmatpush1.msra.mxu0 %v1074
  %1076 = vmatprep.subr.mxu0 0.0
  %v1077 = vand.u32 %v489, 4294901760
  %1078 = vmatpush1.msra.mxu0 %v1077
  %1079 = vmatprep.subr.mxu0 0.0
  %v1080 = vand.u32 %v490, 4294901760
  %1081 = vmatpush1.msra.mxu0 %v1080
  %1082 = vmatprep.subr.mxu0 0.0
  %v1083 = vand.u32 %v491, 4294901760
  %1084 = vmatpush1.msra.mxu0 %v1083
  %1085 = vmatprep.subr.mxu0 0.0
  %v1086 = vand.u32 %v492, 4294901760
  %1087 = vmatpush1.msra.mxu0 %v1086
  %1088 = vmatprep.subr.mxu0 0.0
  %v1089 = vand.u32 %v493, 4294901760
  %1090 = vmatpush1.msra.mxu0 %v1089
  %1091 = vmatprep.subr.mxu0 0.0
  %v1092 = vand.u32 %v494, 4294901760
  %1093 = vmatpush1.msra.mxu0 %v1092
  %1094 = vmatprep.subr.mxu0 0.0
  %v1095 = vand.u32 %v495, 4294901760
  %1096 = vmatpush1.msra.mxu0 %v1095
  %1097 = vmatprep.subr.mxu0 0.0
  %v1098 = vand.u32 %v496, 4294901760
  %1099 = vmatpush1.msra.mxu0 %v1098
  %1100 = vmatprep.subr.mxu0 0.0
  %v1101 = vand.u32 %v497, 4294901760
  %1102 = vmatpush1.msra.mxu0 %v1101
  %1103 = vmatprep.subr.mxu0 0.0
  %v1104 = vand.u32 %v498, 4294901760
  %1105 = vmatpush1.msra.mxu0 %v1104
  %1106 = vmatprep.subr.mxu0 0.0
  %v1107 = vand.u32 %v499, 4294901760
  %1108 = vmatpush1.msra.mxu0 %v1107
  %1109 = vmatprep.subr.mxu0 0.0
  %1110 = vmatpush1.msra.mxu0 0.0
  %1111 = vmatprep.subr.mxu0 0.0
  %1112 = vmatpush1.msra.mxu0 0.0
  %1113 = vmatprep.subr.mxu0 0.0
  %1114 = vmatpush1.msra.mxu0 0.0
  %1115 = vmatprep.subr.mxu0 0.0
  %1116 = vmatpush1.msra.mxu0 0.0
  %1117 = vmatprep.subr.mxu0 0.0
  %1118 = vmatpush1.msra.mxu0 0.0
  %1119 = vmatprep.subr.mxu0 0.0
  %1120 = vmatpush1.msra.mxu0 0.0
  %1121 = vmatprep.subr.mxu0 0.0
  %1122 = vmatpush1.msra.mxu0 0.0
  %1123 = vmatprep.subr.mxu0 0.0
  %1124 = vmatpush1.msra.mxu0 0.0
  %1125 = vmatprep.subr.mxu0 0.0
  %1126 = vmatpush1.msra.mxu0 0.0
  %1127 = vmatprep.subr.mxu0 0.0
  %1128 = vmatpush1.msra.mxu0 0.0
  %1129 = vmatprep.subr.mxu0 0.0
  %1130 = vmatpush1.msra.mxu0 0.0
  %1131 = vmatprep.subr.mxu0 0.0
  %1132 = vmatpush1.msra.mxu0 0.0
  %1133 = vmatprep.subr.mxu0 0.0
  %1134 = vmatpush1.msra.mxu0 0.0
  %1135 = vmatprep.subr.mxu0 0.0
  %1136 = vmatpush1.msra.mxu0 0.0
  %1137 = vmatprep.subr.mxu0 0.0
  %1138 = vmatpush1.msra.mxu0 0.0
  %1139 = vmatprep.subr.mxu0 0.0
  %1140 = vmatpush1.msra.mxu0 0.0
  %1141 = vmatprep.mubr.f32.mxu0 0.0
  %v1142 = vand.u32 %v483, 4294901760
  %1143 = vmatmul.mubr.f32.gmra.mrb[0].mxu0 %v1142
  %v1144 = vpop.f32.mrb[0].mxu0
  %v1145 = vadd.f32 %v1058, %v1144
  %v1146 = vpop.f32.mrb[0].mxu0
  %1147 = vdwg.mxu0
  %vm1148 = vcmask 15360
  %1149 = vst.msk [vmem:[%s5] sm:$0xff] %vm1148, %v1145
  // Predicated region
  $region22: #{net_forward.1} parent=0 // pred_check
    _
  $region23: #{net_forward.1} parent=0 // pred_check_branch
    %1151 = sbr.rel (0) target = $region25
  $region24: #{net_forward.1} parent=0 // pred_region
    _
  $region25: #{net_forward.1} parent=0 // pred_fallthru
    _
  // Predicated region
  $region26: #{net_forward.1} parent=0 // pred_check
    _
  $region27: #{net_forward.1} parent=0 // pred_check_branch
    %1153 = sbr.rel (0) target = $region29
  $region28: #{net_forward.1} parent=0 // pred_region
    _
  $region29: #{net_forward.1} parent=0 // pred_fallthru
    _

</llo_original>
